<compile_context>
chip_gen: v7x
topology: tpu7x:2x2x1
jax: 0.10.0
libtpu: 0.0.40
codegen_flags: <defaults>
</compile_context>

<pallas_src>
import functools
import math

import jax
import jax.numpy as jnp
from jax.experimental import pallas as pl
from jax.experimental.pallas import tpu as pltpu

_INV_SQRT2 = 1.0 / math.sqrt(2.0)
_TANH_C = math.sqrt(2.0 / math.pi)


def _gelu(h, approximate):
    if approximate:
        # tanh-approximate GELU: exp/tanh run on the EUP slot (nearly free when
        # MXU-bound).  NOTE: slightly different numerics vs torch's exact GELU.
        return 0.5 * h * (1.0 + jnp.tanh(_TANH_C * (h + 0.044715 * h * h * h)))
    # Exact erf GELU == torch nn.GELU() default (approximate='none').
    return 0.5 * h * (1.0 + jax.lax.erf(h * _INV_SQRT2))


def _mlp_kernel_single(x_ref, w1_ref, b1_ref, w2_ref, b2_ref, o_ref, *, approximate):
    # Single hidden chunk (weights resident): no accumulator scratch, write
    # the finished tile straight to o_ref.
    h = jnp.dot(x_ref[...], w1_ref[...], preferred_element_type=jnp.float32)
    h = h + b1_ref[...].astype(jnp.float32)
    h = _gelu(h, approximate)
    y = jnp.dot(h.astype(w2_ref.dtype), w2_ref[...], preferred_element_type=jnp.float32)
    o_ref[...] = (y + b2_ref[...].astype(jnp.float32)).astype(o_ref.dtype)


def _mlp_kernel_multi(x_ref, w1_ref, b1_ref, w2_ref, b2_ref, o_ref, acc_ref, *, approximate):
    # x_ref:  (TM, W)    w1_ref: (W, TK)    b1_ref: (1, TK)
    # w2_ref: (TK, W)    b2_ref: (1, W)     o_ref: (TM, W)   acc_ref: (TM, W) f32
    k = pl.program_id(1)

    @pl.when(k == 0)
    def _init():
        acc_ref[...] = jnp.zeros_like(acc_ref)

    h = jnp.dot(x_ref[...], w1_ref[...], preferred_element_type=jnp.float32)
    h = h + b1_ref[...].astype(jnp.float32)
    h = _gelu(h, approximate)
    acc_ref[...] += jnp.dot(
        h.astype(w2_ref.dtype), w2_ref[...], preferred_element_type=jnp.float32
    )

    @pl.when(k == pl.num_programs(1) - 1)
    def _finalize():
        o_ref[...] = (acc_ref[...] + b2_ref[...].astype(jnp.float32)).astype(o_ref.dtype)


def _round_up(x, m):
    return (x + m - 1) // m * m


def _vmem_capacity_bytes():
    try:
        cap = getattr(pltpu.get_tpu_info(), "vmem_capacity_bytes", None)
        if cap:
            return int(cap)
    except Exception:
        pass
    return 128 * 1024 * 1024  # conservative v5e/v6e default


def _footprint_bytes(tm, tk, width, itemsize, multi_k):
    # Double-buffered pipelined blocks: x, out, w1, w2, b1, b2.
    buf = 2 * itemsize * (2 * tm * width + 2 * width * tk + tk + width)
    # f32 accumulator scratch (only when K is chunked).
    acc = 4 * tm * width if multi_k else 0
    # f32 h chunk + ~3x erf/GELU temporaries + the low-precision cast copy of h.
    trans = 4 * 4 * tm * tk + itemsize * tm * tk
    return buf + acc + trans


def mlp_pallas(x, w1, b1, w2, b2, *, row_tile=None, hidden_tile=None,
               vmem_budget_bytes=None, approximate_gelu=False):
    """Fused gelu(x @ w1 + b1) @ w2 + b2.

    x: [N, W]; w1: [W, 4W]; b1: [4W]; w2: [4W, W]; b2: [W].
    """
    n, width = x.shape
    hidden = w1.shape[1]
    assert w1.shape == (width, hidden)
    assert w2.shape == (hidden, width)
    assert b1.shape == (hidden,) and b2.shape == (width,)

    out_dtype = x.dtype
    itemsize = max(jnp.dtype(x.dtype).itemsize, jnp.dtype(w1.dtype).itemsize)
    sublane = {4: 8, 2: 16, 1: 32}.get(itemsize, 8)

    # Generation-aware VMEM budget (~75% of physical: ~96 MiB v5e/v6e, ~48 MiB v7x).
    vmem_cap = _vmem_capacity_bytes()
    if vmem_budget_bytes is None:
        vmem_budget_bytes = int(0.75 * vmem_cap)

    n_rows_aligned = _round_up(max(n, 1), sublane)

    # ---- Tiling decision -------------------------------------------------
    if hidden_tile is None:
        tm_try = _round_up(row_tile, sublane) if row_tile is not None else 256
        tm_try = max(min(tm_try, n_rows_aligned), sublane)
        if _footprint_bytes(tm_try, hidden, width, itemsize, multi_k=False) <= vmem_budget_bytes:
            # Resident-weights path: single k step, constant w1/w2 block index
            # => weights DMA'd from HBM once for the whole kernel.
            hidden_tile = hidden
            if row_tile is None:
                row_tile = tm_try
                for bigger in (1024, 512):  # fewer grid steps if headroom allows
                    if (bigger <= n_rows_aligned and
                            _footprint_bytes(bigger, hidden, width, itemsize, False)
                            <= vmem_budget_bytes):
                        row_tile = bigger
                        break
        else:
            # Streaming path: weights re-read per row tile, so pick a big TM
            # (arithmetic intensity on weight bytes ~ TM FLOP/B in bf16; need
            # ~650 for v6e, ~620 chip-level for megacore v7x), then the largest
            # hidden chunk that fits the budget (fewer k steps -> fewer acc
            # read/writes and less per-step overhead).
            tm_candidates = ([_round_up(row_tile, sublane)] if row_tile is not None
                             else [768, 512, 384, 256, 128])
            tk_candidates = [c for c in (8192, 4096, 2048, 1024, 512, 256, 128)
                             if c <= hidden]
            chosen = None
            for tm in tm_candidates:
                tm = max(min(tm, n_rows_aligned), sublane)
                for prefer_divisor in (True, False):
                    for tk in tk_candidates:
                        if prefer_divisor and hidden % tk != 0:
                            continue
                        if _footprint_bytes(tm, tk, width, itemsize, True) <= vmem_budget_bytes:
                            chosen = (tm, tk)
                            break
                    if chosen is not None:
                        break
                if chosen is not None:
                    break
            if chosen is None:
                chosen = (max(min(128, n_rows_aligned), sublane), min(128, hidden))
            tm_sel, hidden_tile = chosen
            if row_tile is None:
                row_tile = tm_sel

    if row_tile is None:
        row_tile = min(256, n_rows_aligned)
    row_tile = max(_round_up(min(row_tile, n_rows_aligned), sublane), sublane)

    # ---- Zero-pad only the hidden dimension (required for correct K-accum;
    #      GELU(0) * 0-rows of w2 contributes exactly 0).  No padding of x. ----
    hidden_pad = _round_up(hidden, hidden_tile)
    if hidden_pad != hidden:
        w1 = jnp.pad(w1, ((0, 0), (0, hidden_pad - hidden)))
        b1 = jnp.pad(b1, ((0, hidden_pad - hidden),))
        w2 = jnp.pad(w2, ((0, hidden_pad - hidden), (0, 0)))
    b1_2d = b1.reshape(1, hidden_pad)
    b2_2d = b2.reshape(1, width)

    num_row_tiles = -(-n // row_tile)          # cdiv; trailing partial block OK
    num_k = hidden_pad // hidden_tile
    single_k = (num_k == 1)

    footprint = _footprint_bytes(row_tile, hidden_tile, width, itemsize, not single_k)
    vmem_limit = int(min(vmem_cap, max(int(1.3 * footprint), 32 * 1024 * 1024)))

    # Advisory cost estimate with realistic HBM traffic (weights re-read per
    # row tile when streamed; once when resident).
    weight_bytes = 2 * width * hidden * itemsize
    weight_reads = 1 if single_k else num_row_tiles
    cost = pl.CostEstimate(
        flops=4 * n * width * hidden,
        transcendentals=n * hidden,
        bytes_accessed=(2 * n * width * itemsize
                        + weight_reads * weight_bytes
                        + (hidden + width) * itemsize),
    )

    if single_k:
        kernel = functools.partial(_mlp_kernel_single, approximate=approximate_gelu)
        grid = (num_row_tiles,)
        in_specs = [
            pl.BlockSpec((row_tile, width), lambda i: (i, 0)),        # x rows
            pl.BlockSpec((width, hidden_pad), lambda i: (0, 0)),      # w1 (resident)
            pl.BlockSpec((1, hidden_pad), lambda i: (0, 0)),          # b1
            pl.BlockSpec((hidden_pad, width), lambda i: (0, 0)),      # w2 (resident)
            pl.BlockSpec((1, width), lambda i: (0, 0)),               # b2
        ]
        out_specs = pl.BlockSpec((row_tile, width), lambda i: (i, 0))
        scratch_shapes = []
        dim_sem = ("parallel",)
    else:
        kernel = functools.partial(_mlp_kernel_multi, approximate=approximate_gelu)
        grid = (num_row_tiles, num_k)
        in_specs = [
            pl.BlockSpec((row_tile, width), lambda i, k: (i, 0)),       # x rows
            pl.BlockSpec((width, hidden_tile), lambda i, k: (0, k)),    # w1 chunk
            pl.BlockSpec((1, hidden_tile), lambda i, k: (0, k)),        # b1 chunk
            pl.BlockSpec((hidden_tile, width), lambda i, k: (k, 0)),    # w2 chunk
            pl.BlockSpec((1, width), lambda i, k: (0, 0)),              # b2
        ]
        out_specs = pl.BlockSpec((row_tile, width), lambda i, k: (i, 0))
        scratch_shapes = [pltpu.VMEM((row_tile, width), jnp.float32)]
        dim_sem = ("parallel", "arbitrary")

    out = pl.pallas_call(
        kernel,
        out_shape=jax.ShapeDtypeStruct((n, width), out_dtype),
        grid_spec=pltpu.PrefetchScalarGridSpec(
            num_scalar_prefetch=0,
            grid=grid,
            in_specs=in_specs,
            out_specs=out_specs,
            scratch_shapes=scratch_shapes,
        ),
        compiler_params=pltpu.CompilerParams(
            dimension_semantics=dim_sem,
            vmem_limit_bytes=vmem_limit,
        ),
        cost_estimate=cost,
    )(x, w1, b1_2d, w2, b2_2d)
    return out


def init_mlp_params(key, width, dtype=jnp.float32):
    """Deterministic init matching nn.Linear shapes (kaiming-uniform-ish)."""
    k1, k2, k3, k4 = jax.random.split(key, 4)
    hidden = width * 4
    bound1 = 1.0 / math.sqrt(width)
    bound2 = 1.0 / math.sqrt(hidden)
    # Stored as [in, out] (transposed relative to torch's [out, in]).
    w1 = jax.random.uniform(k1, (width, hidden), dtype, -bound1, bound1)
    b1 = jax.random.uniform(k2, (hidden,), dtype, -bound1, bound1)
    w2 = jax.random.uniform(k3, (hidden, width), dtype, -bound2, bound2)
    b2 = jax.random.uniform(k4, (width,), dtype, -bound2, bound2)
    return w1, b1, w2, b2


def mlp_reference(x2d, w1, b1, w2, b2):
    xf = x2d.astype(jnp.float32)
    h = xf @ w1.astype(jnp.float32) + b1.astype(jnp.float32)
    h = 0.5 * h * (1.0 + jax.lax.erf(h * _INV_SQRT2))
    return h @ w2.astype(jnp.float32) + b2.astype(jnp.float32)


if __name__ == "__main__":
    key = jax.random.PRNGKey(0)
    kx, kp, kx2, kp2, kx4 = jax.random.split(key, 5)

    # Case 1: module-scale small shape (batch=2, seq=8, width=32), f32 —
    # resident-weights single-k path.
    batch, seq, width = 2, 8, 32
    x = jax.random.normal(kx, (batch, seq, width), jnp.float32)
    w1, b1, w2, b2 = init_mlp_params(kp, width)
    x2d = x.reshape(batch * seq, width)
    out = mlp_pallas(x2d, w1, b1, w2, b2).reshape(batch, seq, width)
    jax.block_until_ready(out)
    ref = mlp_reference(x2d, w1, b1, w2, b2).reshape(batch, seq, width)
    assert jnp.allclose(out, ref, atol=1e-4, rtol=1e-4), "f32 mismatch vs reference"

    # Case 2: explicit tiles -> multi-k accumulation path plus a partial row
    # block (n=15 not a multiple of row_tile=8; no wrapper-side padding of x).
    n2, width2 = 15, 64
    x2 = jax.random.normal(kx2, (n2, width2), jnp.float32)
    w1b, b1b, w2b, b2b = init_mlp_params(kp2, width2)
    out2 = mlp_pallas(x2, w1b, b1b, w2b, b2b, row_tile=8, hidden_tile=128)
    jax.block_until_ready(out2)
    ref2 = mlp_reference(x2, w1b, b1b, w2b, b2b)
    assert out2.shape == (n2, width2)
    assert jnp.allclose(out2, ref2, atol=1e-4, rtol=1e-4), "tiled mismatch vs reference"

    # Case 3: bf16 operands (full-rate MXU path on v6e/v7x), f32 accumulation.
    out3 = mlp_pallas(
        x2d.astype(jnp.bfloat16),
        w1.astype(jnp.bfloat16), b1.astype(jnp.bfloat16),
        w2.astype(jnp.bfloat16), b2.astype(jnp.bfloat16),
    )
    jax.block_until_ready(out3)
    ref3 = mlp_reference(x2d, w1, b1, w2, b2)
    assert jnp.allclose(out3.astype(jnp.float32), ref3, atol=1e-1, rtol=1e-1), \
        "bf16 mismatch vs f32 reference"

    # Case 4: artificially tiny VMEM budget forces the auto weight-streaming
    # (multi-k) selection path.
    n4 = 64
    x4 = jax.random.normal(kx4, (n4, width2), jnp.float32)
    out4 = mlp_pallas(x4, w1b, b1b, w2b, b2b, vmem_budget_bytes=100 * 1024)
    jax.block_until_ready(out4)
    ref4 = mlp_reference(x4, w1b, b1b, w2b, b2b)
    assert jnp.allclose(out4, ref4, atol=1e-4, rtol=1e-4), "streamed mismatch vs reference"

    print("KERNEL_OK")
</pallas_src>

<mosaic_0001>
module attributes {stable_mosaic.version = 11 : i64} {
  func.func @_mlp_kernel_single(%arg0: i32, %arg1: memref<16x32xf32, #tpu.memory_space<vmem>>, %arg2: memref<32x128xf32, #tpu.memory_space<vmem>>, %arg3: memref<1x128xf32, #tpu.memory_space<vmem>>, %arg4: memref<128x32xf32, #tpu.memory_space<vmem>>, %arg5: memref<1x32xf32, #tpu.memory_space<vmem>>, %arg6: memref<16x32xf32, #tpu.memory_space<vmem>>) attributes {dimension_semantics = [#tpu.dimension_semantics<parallel>], iteration_bounds = array<i64: 1>, scalar_prefetch = 0 : i64, scratch_operands = 0 : i64, tpu.core_type = #tpu.core_type<tc>, window_params = [{transform_indices = @transform_0, window_bounds = array<i64: 16, 32>}, {pipeline_mode = #tpu.pipeline_mode<synchronous>, transform_indices = @transform_1, window_bounds = array<i64: 32, 128>}, {pipeline_mode = #tpu.pipeline_mode<synchronous>, transform_indices = @transform_2, window_bounds = array<i64: 1, 128>}, {pipeline_mode = #tpu.pipeline_mode<synchronous>, transform_indices = @transform_3, window_bounds = array<i64: 128, 32>}, {pipeline_mode = #tpu.pipeline_mode<synchronous>, transform_indices = @transform_4, window_bounds = array<i64: 1, 32>}, {transform_indices = @transform_5, window_bounds = array<i64: 16, 32>}]} {
    %c0 = arith.constant 0 : index
    %c0_0 = arith.constant 0 : index
    %0 = vector.load %arg1[%c0, %c0_0] : memref<16x32xf32, #tpu.memory_space<vmem>>, vector<16x32xf32>
    %c0_1 = arith.constant 0 : index
    %c0_2 = arith.constant 0 : index
    %1 = vector.load %arg2[%c0_1, %c0_2] : memref<32x128xf32, #tpu.memory_space<vmem>>, vector<32x128xf32>
    %cst = arith.constant dense<0.000000e+00> : vector<16x128xf32>
    %2 = tpu.matmul %0, %1, %cst {dimension_numbers = #tpu.dot_dimension_numbers<[1], [0], [0], [1], [0, 0, 1, 1], [], []>} : vector<16x32xf32>, vector<32x128xf32>, vector<16x128xf32> -> vector<16x128xf32>
    %c0_3 = arith.constant 0 : index
    %c0_4 = arith.constant 0 : index
    %3 = vector.load %arg3[%c0_3, %c0_4] : memref<1x128xf32, #tpu.memory_space<vmem>>, vector<1x128xf32>
    %4 = vector.broadcast %3 : vector<1x128xf32> to vector<16x128xf32>
    %5 = arith.addf %2, %4 : vector<16x128xf32>
    %cst_5 = arith.constant 5.000000e-01 : f32
    %6 = vector.broadcast %cst_5 : f32 to vector<16x128xf32>
    %7 = arith.mulf %6, %5 : vector<16x128xf32>
    %cst_6 = arith.constant 0.707106769 : f32
    %8 = vector.broadcast %cst_6 : f32 to vector<16x128xf32>
    %9 = arith.mulf %5, %8 : vector<16x128xf32>
    %10 = math.erf %9 : vector<16x128xf32>
    %cst_7 = arith.constant 1.000000e+00 : f32
    %11 = vector.broadcast %cst_7 : f32 to vector<16x128xf32>
    %12 = arith.addf %11, %10 : vector<16x128xf32>
    %13 = arith.mulf %7, %12 : vector<16x128xf32>
    %c0_8 = arith.constant 0 : index
    %c0_9 = arith.constant 0 : index
    %14 = vector.load %arg4[%c0_8, %c0_9] : memref<128x32xf32, #tpu.memory_space<vmem>>, vector<128x32xf32>
    %cst_10 = arith.constant dense<0.000000e+00> : vector<16x32xf32>
    %15 = tpu.matmul %13, %14, %cst_10 {dimension_numbers = #tpu.dot_dimension_numbers<[1], [0], [0], [1], [0, 0, 1, 1], [], []>} : vector<16x128xf32>, vector<128x32xf32>, vector<16x32xf32> -> vector<16x32xf32>
    %c0_11 = arith.constant 0 : index
    %c0_12 = arith.constant 0 : index
    %16 = vector.load %arg5[%c0_11, %c0_12] : memref<1x32xf32, #tpu.memory_space<vmem>>, vector<1x32xf32>
    %17 = vector.broadcast %16 : vector<1x32xf32> to vector<16x32xf32>
    %18 = arith.addf %15, %17 : vector<16x32xf32>
    %c0_13 = arith.constant 0 : index
    %c0_14 = arith.constant 0 : index
    %19 = vector.load %arg6[%c0_13, %c0_14] : memref<16x32xf32, #tpu.memory_space<vmem>>, vector<16x32xf32>
    tpu.vector_store %arg6[%c0_13, %c0_14], %18 {strides = array<i32>} : memref<16x32xf32, #tpu.memory_space<vmem>>, vector<16x32xf32>,
    return
  }
  func.func @transform_0(%arg0: i32) -> (i32, i32) {
    %c0_i32 = arith.constant 0 : i32
    %c0_i32_0 = arith.constant 0 : i32
    return %arg0, %c0_i32 : i32, i32
  }
  func.func @transform_1(%arg0: i32) -> (i32, i32) {
    %c0_i32 = arith.constant 0 : i32
    %c0_i32_0 = arith.constant 0 : i32
    %c0_i32_1 = arith.constant 0 : i32
    return %c0_i32, %c0_i32_0 : i32, i32
  }
  func.func @transform_2(%arg0: i32) -> (i32, i32) {
    %c0_i32 = arith.constant 0 : i32
    %c0_i32_0 = arith.constant 0 : i32
    %c0_i32_1 = arith.constant 0 : i32
    return %c0_i32, %c0_i32_0 : i32, i32
  }
  func.func @transform_3(%arg0: i32) -> (i32, i32) {
    %c0_i32 = arith.constant 0 : i32
    %c0_i32_0 = arith.constant 0 : i32
    %c0_i32_1 = arith.constant 0 : i32
    return %c0_i32, %c0_i32_0 : i32, i32
  }
  func.func @transform_4(%arg0: i32) -> (i32, i32) {
    %c0_i32 = arith.constant 0 : i32
    %c0_i32_0 = arith.constant 0 : i32
    %c0_i32_1 = arith.constant 0 : i32
    return %c0_i32, %c0_i32_0 : i32, i32
  }
  func.func @transform_5(%arg0: i32) -> (i32, i32) {
    %c0_i32 = arith.constant 0 : i32
    %c0_i32_0 = arith.constant 0 : i32
    return %arg0, %c0_i32 : i32, i32
  }
}

</mosaic_0001>

<llo_original>
// kernel: tpu_custom_call.1
$region0: #{tpu_custom_call.1}
  #allocation0 [shape = 'u32[]', space=smem, size = 0x4, offset = 0x4, fixed_abs, tag = 'smem constant byte address 0x4 - core index']
  #allocation1 [shape = 'u32[144,128]{1,0:T(1,128)}', space=vmem, size = 0x12000, scoped, tag = 'internal scratch']
  %s0 = inlined_call_operand.vmem [shape: f32[16,32], index: 0, kind: input, shape index: {}]
  %s1 = inlined_call_operand.vmem [shape: f32[32,128], index: 1, kind: input, shape index: {}]
  %s2 = inlined_call_operand.vmem [shape: f32[1,128], index: 2, kind: input, shape index: {}]
  %s3 = inlined_call_operand.vmem [shape: f32[128,32], index: 3, kind: input, shape index: {}]
  %s4 = inlined_call_operand.vmem [shape: f32[1,32], index: 4, kind: input, shape index: {}]
  %s5 = inlined_call_operand.hbm [shape: f32[16,32], index: 5, kind: output, shape index: {}]
  %s6 = sld [smem:[#allocation0]]
  $region30: #{tpu_custom_call.1} parent=0
    _
  %s8 = ssub.s32 1, %s6
  %s9 = scalar_select 0, %s8, %s6
  $region1: #{tpu_custom_call.1} parent=0
    #allocation2 [shape = 'u8[8192]{0}', space=vmem, size = 0x2000, scoped, tag = 'output window, operand 0, single buffered']
    #allocation3 [shape = 's32[1]{0}', space=sflag, size = 0x4, scoped, tag = 'scoped memory for tpu_custom_call.1']
    %10 = vsyncpa [#allocation3], 0
    // Predicated region
    $region2: #{tpu_custom_call.1} parent=1 // pred_check
      _
    $region3: #{tpu_custom_call.1} parent=1 // pred_check_branch
      %12 = sbr.rel (0) target = $region5
    $region4: #{tpu_custom_call.1} parent=1 // pred_region
      _
    $region5: #{tpu_custom_call.1} parent=1 // pred_fallthru
      _
    // Predicated region
    $region6: #{tpu_custom_call.1} parent=1 // pred_check
      _
    $region7: #{tpu_custom_call.1} parent=1 // pred_check_branch
      %14 = sbr.rel (0) target = $region9
    $region8: #{tpu_custom_call.1} parent=1 // pred_region
      _
    $region9: #{tpu_custom_call.1} parent=1 // pred_fallthru
      _
    // Predicated region
    $region10: #{tpu_custom_call.1} parent=1 // pred_check
      _
    $region11: #{tpu_custom_call.1} parent=1 // pred_check_branch
      %16 = sbr.rel (0) target = $region13
    $region12: #{tpu_custom_call.1} parent=1 // pred_region
      _
    $region13: #{tpu_custom_call.1} parent=1 // pred_fallthru
      _
    // Predicated region
    $region14: #{tpu_custom_call.1} parent=1 // pred_check
      _
    $region15: #{tpu_custom_call.1} parent=1 // pred_check_branch
      %18 = sbr.rel (0) target = $region17
    $region16: #{tpu_custom_call.1} parent=1 // pred_region
      _
    $region17: #{tpu_custom_call.1} parent=1 // pred_fallthru
      _
    // Predicated region
    $region18: #{tpu_custom_call.1} parent=1 // pred_check
      _
    $region19: #{tpu_custom_call.1} parent=1 // pred_check_branch
      %20 = sbr.rel (0) target = $region21
    $region20: #{tpu_custom_call.1} parent=1 // pred_region
      _
    $region21: #{tpu_custom_call.1} parent=1 // pred_fallthru
      _
    %v21 = vld [vmem:[%s0] sm:$0xff]
    %v22 = vld [vmem:[%s0 + $0x8] sm:$0xff]
    %v23 = vld [vmem:[%s1] sm:$0xff]
    %v24 = vld [vmem:[%s1 + $0x8] sm:$0xff]
    %v25 = vld [vmem:[%s1 + $0x10] sm:$0xff]
    %v26 = vld [vmem:[%s1 + $0x18] sm:$0xff]
    %v27 = vld [vmem:[%s2] sm:$0x1]
    %v29 = vlaneseq
    %v30 = vshrl.u32 %v29, 7
    %v31 = vsub.s32 0, %v30
    %v32 = vrot.slane %v27, %v31
    %vm34 = vcmask 261120
    %v36 = vsel %vm34, %v21, 0
    %v39 = vsel %vm34, %v22, 0
    %41 = vmatprep.subr.mxu0 0.0
    %42 = vmatpush1.msra.mxu0 %v23
    %43 = vmatprep.subr.mxu0 0.0
    %44 = vmatpush1.msra.mxu0 %v24
    %45 = vmatprep.subr.mxu0 0.0
    %46 = vmatpush1.msra.mxu0 %v25
    %47 = vmatprep.subr.mxu0 0.0
    %48 = vmatpush1.msra.mxu0 %v26
    %49 = vmatprep.subr.mxu0 0.0
    %50 = vmatpush1.msra.mxu0 0.0
    %51 = vmatprep.subr.mxu0 0.0
    %52 = vmatpush1.msra.mxu0 0.0
    %53 = vmatprep.subr.mxu0 0.0
    %54 = vmatpush1.msra.mxu0 0.0
    %55 = vmatprep.subr.mxu0 0.0
    %56 = vmatpush1.msra.mxu0 0.0
    %57 = vmatprep.subr.mxu0 0.0
    %58 = vmatpush1.msra.mxu0 0.0
    %59 = vmatprep.subr.mxu0 0.0
    %60 = vmatpush1.msra.mxu0 0.0
    %61 = vmatprep.subr.mxu0 0.0
    %62 = vmatpush1.msra.mxu0 0.0
    %63 = vmatprep.subr.mxu0 0.0
    %64 = vmatpush1.msra.mxu0 0.0
    %65 = vmatprep.subr.mxu0 0.0
    %66 = vmatpush1.msra.mxu0 0.0
    %67 = vmatprep.subr.mxu0 0.0
    %68 = vmatpush1.msra.mxu0 0.0
    %69 = vmatprep.subr.mxu0 0.0
    %70 = vmatpush1.msra.mxu0 0.0
    %71 = vmatprep.subr.mxu0 0.0
    %72 = vmatpush1.msra.mxu0 0.0
    %73 = vmatprep.subr.mxu0 0.0
    %74 = vmatpush1.msra.mxu0 0.0
    %75 = vmatprep.subr.mxu0 0.0
    %76 = vmatpush1.msra.mxu0 0.0
    %77 = vmatprep.subr.mxu0 0.0
    %78 = vmatpush1.msra.mxu0 0.0
    %79 = vmatprep.subr.mxu0 0.0
    %80 = vmatpush1.msra.mxu0 0.0
    %81 = vmatprep.subr.mxu0 0.0
    %82 = vmatpush1.msra.mxu0 0.0
    %83 = vmatprep.subr.mxu0 0.0
    %84 = vmatpush1.msra.mxu0 0.0
    %85 = vmatprep.subr.mxu0 0.0
    %86 = vmatpush1.msra.mxu0 0.0
    %87 = vmatprep.subr.mxu0 0.0
    %88 = vmatpush1.msra.mxu0 0.0
    %89 = vmatprep.subr.mxu0 0.0
    %90 = vmatpush1.msra.mxu0 0.0
    %91 = vmatprep.subr.mxu0 0.0
    %92 = vmatpush1.msra.mxu0 0.0
    %93 = vmatprep.subr.mxu0 0.0
    %94 = vmatpush1.msra.mxu0 0.0
    %95 = vmatprep.subr.mxu0 0.0
    %96 = vmatpush1.msra.mxu0 0.0
    %97 = vmatprep.subr.mxu0 0.0
    %98 = vmatpush1.msra.mxu0 0.0
    %99 = vmatprep.subr.mxu0 0.0
    %100 = vmatpush1.msra.mxu0 0.0
    %101 = vmatprep.subr.mxu0 0.0
    %102 = vmatpush1.msra.mxu0 0.0
    %103 = vmatprep.subr.mxu0 0.0
    %104 = vmatpush1.msra.mxu0 0.0
    %105 = vmatprep.mubr.f32.mxu0 0.0
    %106 = vmatmul.mubr.f32.gmra.mrb[0].mxu0 %v36
    %v107 = vpop.f32.mrb[0].mxu0
    %v108 = vadd.f32 %v32, %v107
    %v109 = vpop.f32.mrb[0].mxu0
    %110 = vmatprep.mubr.f32.mxu0 0.0
    %111 = vmatmul.mubr.f32.gmra.mrb[0].mxu0 %v39
    %v112 = vpop.f32.mrb[0].mxu0
    %v113 = vadd.f32 %v32, %v112
    %v114 = vpop.f32.mrb[0].mxu0
    %115 = vdwg.mxu0
    %v116 = vmul.f32 %v108, 0.5
    %v117 = vmul.f32 %v113, 0.5
    %v118 = vmul.f32 %v108, 0.70710677
    %v119 = vmul.f32 %v113, 0.70710677
    %v120 = verf.f32.pop %v118
    %v121 = verf.f32.pop %v119
    %v122 = vadd.f32 %v120, 1.0
    %v123 = vadd.f32 %v121, 1.0
    %v124 = vmul.f32 %v116, %v122
    %v125 = vmul.f32 %v117, %v123
    %v126 = vld [vmem:[%s3] sm:$0xff]
    %v127 = vld [vmem:[%s3 + $0x8] sm:$0xff]
    %v128 = vld [vmem:[%s3 + $0x10] sm:$0xff]
    %v129 = vld [vmem:[%s3 + $0x18] sm:$0xff]
    %v130 = vld [vmem:[%s3 + $0x20] sm:$0xff]
    %v131 = vld [vmem:[%s3 + $0x28] sm:$0xff]
    %v132 = vld [vmem:[%s3 + $0x30] sm:$0xff]
    %v133 = vld [vmem:[%s3 + $0x38] sm:$0xff]
    %v134 = vld [vmem:[%s3 + $0x40] sm:$0xff]
    %v135 = vld [vmem:[%s3 + $0x48] sm:$0xff]
    %v136 = vld [vmem:[%s3 + $0x50] sm:$0xff]
    %v137 = vld [vmem:[%s3 + $0x58] sm:$0xff]
    %v138 = vld [vmem:[%s3 + $0x60] sm:$0xff]
    %v139 = vld [vmem:[%s3 + $0x68] sm:$0xff]
    %v140 = vld [vmem:[%s3 + $0x70] sm:$0xff]
    %v141 = vld [vmem:[%s3 + $0x78] sm:$0xff]
    %v142 = vld [vmem:[%s4] sm:$0x1]
    %v144 = vlaneseq
    %v145 = vshrl.u32 %v144, 7
    %v146 = vsub.s32 0, %v145
    %v147 = vrot.slane %v142, %v146
    %149 = vmatprep.subr.mxu0 0.0
    %150 = vmatpush1.msra.mxu0 %v126
    %151 = vmatprep.subr.mxu0 0.0
    %152 = vmatpush1.msra.mxu0 %v127
    %153 = vmatprep.subr.mxu0 0.0
    %154 = vmatpush1.msra.mxu0 %v128
    %155 = vmatprep.subr.mxu0 0.0
    %156 = vmatpush1.msra.mxu0 %v129
    %157 = vmatprep.subr.mxu0 0.0
    %158 = vmatpush1.msra.mxu0 %v130
    %159 = vmatprep.subr.mxu0 0.0
    %160 = vmatpush1.msra.mxu0 %v131
    %161 = vmatprep.subr.mxu0 0.0
    %162 = vmatpush1.msra.mxu0 %v132
    %163 = vmatprep.subr.mxu0 0.0
    %164 = vmatpush1.msra.mxu0 %v133
    %165 = vmatprep.subr.mxu0 0.0
    %166 = vmatpush1.msra.mxu0 %v134
    %167 = vmatprep.subr.mxu0 0.0
    %168 = vmatpush1.msra.mxu0 %v135
    %169 = vmatprep.subr.mxu0 0.0
    %170 = vmatpush1.msra.mxu0 %v136
    %171 = vmatprep.subr.mxu0 0.0
    %172 = vmatpush1.msra.mxu0 %v137
    %173 = vmatprep.subr.mxu0 0.0
    %174 = vmatpush1.msra.mxu0 %v138
    %175 = vmatprep.subr.mxu0 0.0
    %176 = vmatpush1.msra.mxu0 %v139
    %177 = vmatprep.subr.mxu0 0.0
    %178 = vmatpush1.msra.mxu0 %v140
    %179 = vmatprep.subr.mxu0 0.0
    %180 = vmatpush1.msra.mxu0 %v141
    %181 = vmatprep.subr.mxu0 0.0
    %182 = vmatpush1.msra.mxu0 0.0
    %183 = vmatprep.subr.mxu0 0.0
    %184 = vmatpush1.msra.mxu0 0.0
    %185 = vmatprep.subr.mxu0 0.0
    %186 = vmatpush1.msra.mxu0 0.0
    %187 = vmatprep.subr.mxu0 0.0
    %188 = vmatpush1.msra.mxu0 0.0
    %189 = vmatprep.subr.mxu0 0.0
    %190 = vmatpush1.msra.mxu0 0.0
    %191 = vmatprep.subr.mxu0 0.0
    %192 = vmatpush1.msra.mxu0 0.0
    %193 = vmatprep.subr.mxu0 0.0
    %194 = vmatpush1.msra.mxu0 0.0
    %195 = vmatprep.subr.mxu0 0.0
    %196 = vmatpush1.msra.mxu0 0.0
    %197 = vmatprep.subr.mxu0 0.0
    %198 = vmatpush1.msra.mxu0 0.0
    %199 = vmatprep.subr.mxu0 0.0
    %200 = vmatpush1.msra.mxu0 0.0
    %201 = vmatprep.subr.mxu0 0.0
    %202 = vmatpush1.msra.mxu0 0.0
    %203 = vmatprep.subr.mxu0 0.0
    %204 = vmatpush1.msra.mxu0 0.0
    %205 = vmatprep.subr.mxu0 0.0
    %206 = vmatpush1.msra.mxu0 0.0
    %207 = vmatprep.subr.mxu0 0.0
    %208 = vmatpush1.msra.mxu0 0.0
    %209 = vmatprep.subr.mxu0 0.0
    %210 = vmatpush1.msra.mxu0 0.0
    %211 = vmatprep.subr.mxu0 0.0
    %212 = vmatpush1.msra.mxu0 0.0
    %213 = vmatprep.mubr.f32.mxu0 0.0
    %214 = vmatmul.mubr.f32.gmra.mrb[0].mxu0 %v124
    %v215 = vpop.f32.mrb[0].mxu0
    %v216 = vadd.f32 %v147, %v215
    %v217 = vpop.f32.mrb[0].mxu0
    %218 = vmatprep.mubr.f32.mxu0 0.0
    %219 = vmatmul.mubr.f32.gmra.mrb[0].mxu0 %v125
    %v220 = vpop.f32.mrb[0].mxu0
    %v221 = vadd.f32 %v147, %v220
    %v222 = vpop.f32.mrb[0].mxu0
    %223 = vdwg.mxu0
    %224 = vst.msk [vmem:[#allocation2] sm:$0xff] %vm34, %v216
    %225 = vst.msk [vmem:[#allocation2 + $0x8] sm:$0xff] %vm34, %v221
    // Predicated region
    $region22: #{tpu_custom_call.1} parent=1 // pred_check
      _
    $region23: #{tpu_custom_call.1} parent=1 // pred_check_branch
      %227 = sbr.rel (0) target = $region25
    $region24: #{tpu_custom_call.1} parent=1 // pred_region
      %s229 = ssub.s32 256, 256
      %230 = vsyncadd [#allocation3], %s229
      %s231 = sshll.u32 [#allocation2], 4
      %s232 = int_to_ptr.vmem [resolvable:$true] %s231
      %237 = dma.vmem_to_hbm [thread:$0]  %s232, 256, %s5, [#allocation3], 128, 128, 8
    $region25: #{tpu_custom_call.1} parent=1 // pred_fallthru
      _
    // Predicated region
    $region26: #{tpu_custom_call.1} parent=1 // pred_check
      _
    $region27: #{tpu_custom_call.1} parent=1 // pred_check_branch
      %239 = sbr.rel (0) target = $region29
    $region28: #{tpu_custom_call.1} parent=1 // pred_region
      %240 = dma.done [#allocation3], 256
    $region29: #{tpu_custom_call.1} parent=1 // pred_fallthru
      _
    %241 = vsyncpa [#allocation3], 1

</llo_original>
